<compile_context>
chip_gen: v7x
topology: tpu7x:2x2x1
jax: 0.10.0
libtpu: 0.0.40
codegen_flags: <defaults>
</compile_context>

<pallas_src>
import jax
import jax.numpy as jnp
from jax.experimental import pallas as pl
from jax.experimental.pallas import tpu as pltpu

DIA_FEAT_DIM = 384          # all-MiniLM-L6-v2
MLP_HIDDEN = [128, 64]      # mlp_hidden_sizes
ROW_TILE_BASE = 256         # multiple of 256 (v6e/v7x MXU rows), 128 (v5e), 8 (sublane)
MAX_ROW_TILE = 2048         # x tile 1.5 MiB bf16, double-buffered ~3 MiB


def _choose_row_tile(m: int) -> int:
    """Pick the row tile: as large as useful, but keep >=2 grid steps when possible
    (v7x has 2 TensorCores sharing the 'parallel' grid axis)."""
    if m <= 2 * ROW_TILE_BASE:
        return ROW_TILE_BASE
    tm = (m // 2) // ROW_TILE_BASE * ROW_TILE_BASE
    return max(ROW_TILE_BASE, min(MAX_ROW_TILE, tm))


def _mlp_kernel(x_ref, w1_ref, b1_ref, w2_ref, b2_ref, w3_ref, b3_ref, o_ref):
    """Fused MLP head: (Linear -> ReLU) x2 -> Linear(., 1). Dropout is identity (eval)."""
    x = x_ref[...]                                                       # (tm, 384) bf16
    h1 = jnp.dot(x, w1_ref[...], preferred_element_type=jnp.float32)     # (tm, 128) f32 acc
    h1 = jnp.maximum(h1 + b1_ref[...], 0.0)                              # ReLU (activation_clf)
    h2 = jnp.dot(h1.astype(jnp.bfloat16), w2_ref[...],
                 preferred_element_type=jnp.float32)                     # (tm, 64) f32 acc
    h2 = jnp.maximum(h2 + b2_ref[...], 0.0)
    # Final Linear(64 -> 1): VPU multiply + cross-lane reduce instead of an N=1 MXU
    # matmul (which would waste 255/256 of the MXU output width).
    o = jnp.sum(h2 * w3_ref[...], axis=-1, keepdims=True) + b3_ref[0]    # (tm, 1) f32
    o_ref[...] = o.astype(o_ref.dtype)


@jax.jit
def story_sum_forward(dia_enc, params):
    """dia_enc: (B, L, DIA_FEAT_DIM) float32. Returns logits (B, L) float32."""
    b, l, d = dia_enc.shape
    assert d == DIA_FEAT_DIM
    m = b * l

    w1, b1, w2, b2, w3, b3 = params
    h1, h2 = MLP_HIDDEN

    tm = _choose_row_tile(m)
    m_pad = ((m + tm - 1) // tm) * tm                 # pad rows to the tile (no assert)

    x = dia_enc.reshape(m, d).astype(jnp.bfloat16)    # stream activations in bf16
    if m_pad != m:
        x = jnp.pad(x, ((0, m_pad - m), (0, 0)))

    out = pl.pallas_call(
        _mlp_kernel,
        out_shape=jax.ShapeDtypeStruct((m_pad, 1), jnp.float32),
        grid_spec=pltpu.PrefetchScalarGridSpec(
            num_scalar_prefetch=0,
            grid=(m_pad // tm,),
            in_specs=[
                pl.BlockSpec((tm, d), lambda i: (i, 0)),            # x rows (pipelined)
                pl.BlockSpec((d, h1), lambda i: (0, 0)),            # W1 (grid-invariant)
                pl.BlockSpec((1, h1), lambda i: (0, 0)),            # b1
                pl.BlockSpec((h1, h2), lambda i: (0, 0)),           # W2
                pl.BlockSpec((1, h2), lambda i: (0, 0)),            # b2
                pl.BlockSpec((1, h2), lambda i: (0, 0)),            # W3 as a (1, 64) row
                pl.BlockSpec(memory_space=pltpu.MemorySpace.SMEM),  # b3 scalar in SMEM
            ],
            out_specs=pl.BlockSpec((tm, 1), lambda i: (i, 0)),      # (tm, 1) logits block
        ),
        compiler_params=pltpu.CompilerParams(
            dimension_semantics=("parallel",)),
    )(x,
      w1.astype(jnp.bfloat16), b1,
      w2.astype(jnp.bfloat16), b2,
      w3.reshape(1, h2).astype(jnp.float32),
      b3.reshape(-1).astype(jnp.float32))

    # .squeeze(dim=-1) then un-flatten back to (B, L); drop padded rows.
    return out[:m, 0].reshape(b, l)


def init_params(key):
    """Deterministic weights: trunc_normal(std=0.02) for Linear weights, zeros for biases
    (matches StorySum._init_weights). Stored as (in, out) / (1, out)."""
    sizes = [DIA_FEAT_DIM] + MLP_HIDDEN + [1]
    params = []
    for i in range(len(sizes) - 1):
        key, sub = jax.random.split(key)
        # torch trunc_normal_ truncates at +/- 2 std by default
        w = 0.02 * jax.random.truncated_normal(
            sub, -2.0, 2.0, (sizes[i], sizes[i + 1]), dtype=jnp.float32)
        b = jnp.zeros((1, sizes[i + 1]), dtype=jnp.float32)
        params.extend([w, b])
    return tuple(params)


def reference_forward(dia_enc, params, match_kernel_precision=True):
    """Plain-JAX reference of the same MLP head. With match_kernel_precision=True it uses
    the same bf16-input / f32-accumulation scheme as the kernel for a tight comparison."""
    w1, b1, w2, b2, w3, b3 = params
    if match_kernel_precision:
        x = dia_enc.astype(jnp.bfloat16)
        w1 = w1.astype(jnp.bfloat16)
        w2 = w2.astype(jnp.bfloat16)
    else:
        x = dia_enc
    h = jnp.maximum(jnp.dot(x, w1, preferred_element_type=jnp.float32) + b1, 0.0)
    if match_kernel_precision:
        h = h.astype(jnp.bfloat16)
    h = jnp.maximum(jnp.dot(h, w2, preferred_element_type=jnp.float32) + b2, 0.0)
    return (jnp.dot(h, w3, preferred_element_type=jnp.float32) + b3)[..., 0]


if __name__ == "__main__":
    key = jax.random.PRNGKey(0)
    k_feat, k_param = jax.random.split(key)

    B, L = 2, 16  # batch of episodes, number of dialogues
    dia_enc = jax.random.normal(k_feat, (B, L, DIA_FEAT_DIM), dtype=jnp.float32)
    params = init_params(k_param)

    logits = story_sum_forward(dia_enc, params)
    logits = jax.block_until_ready(logits)

    ref = reference_forward(dia_enc, params, match_kernel_precision=True)
    assert logits.shape == (B, L)
    assert jnp.allclose(logits, ref, atol=1e-3, rtol=1e-2), "mismatch vs JAX reference"

    print("KERNEL_OK")
</pallas_src>

<mosaic_0001>
module attributes {stable_mosaic.version = 11 : i64} {
  func.func @_mlp_kernel(%arg0: i32, %arg1: memref<256x384xbf16, #tpu.memory_space<vmem>>, %arg2: memref<384x128xbf16, #tpu.memory_space<vmem>>, %arg3: memref<1x128xf32, #tpu.memory_space<vmem>>, %arg4: memref<128x64xbf16, #tpu.memory_space<vmem>>, %arg5: memref<1x64xf32, #tpu.memory_space<vmem>>, %arg6: memref<1x64xf32, #tpu.memory_space<vmem>>, %arg7: memref<1xf32, #tpu.memory_space<smem>>, %arg8: memref<256x1xf32, #tpu.memory_space<vmem>>) attributes {dimension_semantics = [#tpu.dimension_semantics<parallel>], iteration_bounds = array<i64: 1>, scalar_prefetch = 0 : i64, scratch_operands = 0 : i64, tpu.core_type = #tpu.core_type<tc>, window_params = [{transform_indices = @transform_0, window_bounds = array<i64: 256, 384>}, {pipeline_mode = #tpu.pipeline_mode<synchronous>, transform_indices = @transform_1, window_bounds = array<i64: 384, 128>}, {pipeline_mode = #tpu.pipeline_mode<synchronous>, transform_indices = @transform_2, window_bounds = array<i64: 1, 128>}, {pipeline_mode = #tpu.pipeline_mode<synchronous>, transform_indices = @transform_3, window_bounds = array<i64: 128, 64>}, {pipeline_mode = #tpu.pipeline_mode<synchronous>, transform_indices = @transform_4, window_bounds = array<i64: 1, 64>}, {pipeline_mode = #tpu.pipeline_mode<synchronous>, transform_indices = @transform_5, window_bounds = array<i64: 1, 64>}, {transform_indices = @transform_6, window_bounds = array<i64: 1>}, {transform_indices = @transform_7, window_bounds = array<i64: 256, 1>}]} {
    %c0 = arith.constant 0 : index
    %c0_0 = arith.constant 0 : index
    %0 = vector.load %arg1[%c0, %c0_0] : memref<256x384xbf16, #tpu.memory_space<vmem>>, vector<256x384xbf16>
    %c0_1 = arith.constant 0 : index
    %c0_2 = arith.constant 0 : index
    %1 = vector.load %arg2[%c0_1, %c0_2] : memref<384x128xbf16, #tpu.memory_space<vmem>>, vector<384x128xbf16>
    %cst = arith.constant dense<0.000000e+00> : vector<256x128xf32>
    %2 = tpu.matmul %0, %1, %cst {dimension_numbers = #tpu.dot_dimension_numbers<[1], [0], [0], [1], [0, 0, 1, 1], [], []>} : vector<256x384xbf16>, vector<384x128xbf16>, vector<256x128xf32> -> vector<256x128xf32>
    %c0_3 = arith.constant 0 : index
    %c0_4 = arith.constant 0 : index
    %3 = vector.load %arg3[%c0_3, %c0_4] : memref<1x128xf32, #tpu.memory_space<vmem>>, vector<1x128xf32>
    %4 = vector.broadcast %3 : vector<1x128xf32> to vector<256x128xf32>
    %5 = arith.addf %2, %4 : vector<256x128xf32>
    %cst_5 = arith.constant 0.000000e+00 : f32
    %6 = vector.broadcast %cst_5 : f32 to vector<256x128xf32>
    %7 = arith.maximumf %5, %6 : vector<256x128xf32>
    %8 = arith.truncf %7 : vector<256x128xf32> to vector<256x128xbf16>
    %c0_6 = arith.constant 0 : index
    %c0_7 = arith.constant 0 : index
    %9 = vector.load %arg4[%c0_6, %c0_7] : memref<128x64xbf16, #tpu.memory_space<vmem>>, vector<128x64xbf16>
    %cst_8 = arith.constant dense<0.000000e+00> : vector<256x64xf32>
    %10 = tpu.matmul %8, %9, %cst_8 {dimension_numbers = #tpu.dot_dimension_numbers<[1], [0], [0], [1], [0, 0, 1, 1], [], []>} : vector<256x128xbf16>, vector<128x64xbf16>, vector<256x64xf32> -> vector<256x64xf32>
    %c0_9 = arith.constant 0 : index
    %c0_10 = arith.constant 0 : index
    %11 = vector.load %arg5[%c0_9, %c0_10] : memref<1x64xf32, #tpu.memory_space<vmem>>, vector<1x64xf32>
    %12 = vector.broadcast %11 : vector<1x64xf32> to vector<256x64xf32>
    %13 = arith.addf %10, %12 : vector<256x64xf32>
    %cst_11 = arith.constant 0.000000e+00 : f32
    %14 = vector.broadcast %cst_11 : f32 to vector<256x64xf32>
    %15 = arith.maximumf %13, %14 : vector<256x64xf32>
    %c0_12 = arith.constant 0 : index
    %c0_13 = arith.constant 0 : index
    %16 = vector.load %arg6[%c0_12, %c0_13] : memref<1x64xf32, #tpu.memory_space<vmem>>, vector<1x64xf32>
    %17 = vector.broadcast %16 : vector<1x64xf32> to vector<256x64xf32>
    %18 = arith.mulf %15, %17 : vector<256x64xf32>
    %cst_14 = arith.constant dense<0.000000e+00> : vector<256xf32>
    %19 = vector.multi_reduction <add>, %18, %cst_14 [1] : vector<256x64xf32> to vector<256xf32>
    %20 = vector.shape_cast %19 : vector<256xf32> to vector<256x1xf32>
    %c0_15 = arith.constant 0 : index
    %21 = memref.load %arg7[%c0_15] : memref<1xf32, #tpu.memory_space<smem>>
    %22 = vector.broadcast %21 : f32 to vector<256x1xf32>
    %23 = arith.addf %20, %22 : vector<256x1xf32>
    %c0_16 = arith.constant 0 : index
    %c0_17 = arith.constant 0 : index
    %24 = vector.load %arg8[%c0_16, %c0_17] : memref<256x1xf32, #tpu.memory_space<vmem>>, vector<256x1xf32>
    tpu.vector_store %arg8[%c0_16, %c0_17], %23 {strides = array<i32>} : memref<256x1xf32, #tpu.memory_space<vmem>>, vector<256x1xf32>,
    return
  }
  func.func @transform_0(%arg0: i32) -> (i32, i32) {
    %c0_i32 = arith.constant 0 : i32
    %c0_i32_0 = arith.constant 0 : i32
    return %arg0, %c0_i32 : i32, i32
  }
  func.func @transform_1(%arg0: i32) -> (i32, i32) {
    %c0_i32 = arith.constant 0 : i32
    %c0_i32_0 = arith.constant 0 : i32
    %c0_i32_1 = arith.constant 0 : i32
    return %c0_i32, %c0_i32_0 : i32, i32
  }
  func.func @transform_2(%arg0: i32) -> (i32, i32) {
    %c0_i32 = arith.constant 0 : i32
    %c0_i32_0 = arith.constant 0 : i32
    %c0_i32_1 = arith.constant 0 : i32
    return %c0_i32, %c0_i32_0 : i32, i32
  }
  func.func @transform_3(%arg0: i32) -> (i32, i32) {
    %c0_i32 = arith.constant 0 : i32
    %c0_i32_0 = arith.constant 0 : i32
    %c0_i32_1 = arith.constant 0 : i32
    return %c0_i32, %c0_i32_0 : i32, i32
  }
  func.func @transform_4(%arg0: i32) -> (i32, i32) {
    %c0_i32 = arith.constant 0 : i32
    %c0_i32_0 = arith.constant 0 : i32
    %c0_i32_1 = arith.constant 0 : i32
    return %c0_i32, %c0_i32_0 : i32, i32
  }
  func.func @transform_5(%arg0: i32) -> (i32, i32) {
    %c0_i32 = arith.constant 0 : i32
    %c0_i32_0 = arith.constant 0 : i32
    %c0_i32_1 = arith.constant 0 : i32
    return %c0_i32, %c0_i32_0 : i32, i32
  }
  func.func @transform_6(%arg0: i32) -> i32 {
    %c0_i32 = arith.constant 0 : i32
    %c0_i32_0 = arith.constant 0 : i32
    return %c0_i32 : i32
  }
  func.func @transform_7(%arg0: i32) -> (i32, i32) {
    %c0_i32 = arith.constant 0 : i32
    %c0_i32_0 = arith.constant 0 : i32
    return %arg0, %c0_i32 : i32, i32
  }
}

</mosaic_0001>

<llo_original>
// kernel: squeeze.1
$region0: #{squeeze.1}
  %s0 = inlined_call_operand.vmem [shape: f32[32], index: 0, kind: input, shape index: {}]
  %s1 = inlined_call_operand.hbm [shape: f32[2,16], index: 1, kind: output, shape index: {}]
  $region1: #{squeeze.1} parent=0
    #allocation0 [shape = 'u8[1024]{0}', space=vmem, size = 0x400, scoped, tag = 'operand span for operand 1']
    #allocation1 [shape = 's32[1]{0}', space=sflag, size = 0x4, scoped, tag = 'scoped memory for squeeze.1']
    #allocation2 [shape = 'u8[4096]{0}', space=vmem, size = 0x1000, scoped, tag = 'scoped mem for output reshape']
    #allocation3 [shape = 'u8[4096]{0}', space=vmem, size = 0x1000, scoped, tag = 'scoped mem for input reshape']
    %2 = vsyncpa [#allocation1], 0
    %s4 = sshllo.u32 0, 1
    %v5 = vld [vmem:[%s0] sm:%s4]
    %6 = vst [vmem:[#allocation3] sm:%s4] %v5
    %v7 = vld [vmem:[#allocation3] sm:$0x1]
    %vm8 = vcmask 130048
    %9 = vst.msk [vmem:[#allocation2] sm:$0x1] %vm8, %v7
    %v10 = vld [vmem:[#allocation3] sm:$0x1]
    %11 = vrot.lane.b32.xlu0 %v10, 112
    %v12 = vpop.permute.xlu0 %11
    %vm13 = vcmask 130048
    %s14 = scalar_lea.vmem [#allocation2], 1
    %15 = vst.msk [vmem:[%s14] sm:$0x1] %vm13, %v12
    %s17 = sshllo.u32 0, 2
    %v19 = vld [vmem:[#allocation2] sm:%s17]
    %s20 = sshllo.u32 0, 2
    %21 = vst [vmem:[#allocation0] sm:%s20] %v19
    %s23 = ssub.s32 32, 32
    %24 = vsyncadd [#allocation1], %s23
    %s26 = sshll.u32 [#allocation0], 4
    %s27 = int_to_ptr.vmem [resolvable:$true] %s26
    %29 = dma.vmem_to_hbm [thread:$0]  %s27, 32, %s1, [#allocation1]
    %30 = dma.done [#allocation1], 32
    %31 = vsyncpa [#allocation1], 1

// kernel: story_sum_forward.1
$region0: #{story_sum_forward.1}
  #allocation0 [shape = 'u32[]', space=smem, size = 0x4, offset = 0x4, fixed_abs, tag = 'smem constant byte address 0x4 - core index']
  #allocation1 [shape = 'u32[144,128]{1,0:T(1,128)}', space=vmem, size = 0x12000, scoped, tag = 'internal scratch']
  #allocation2 [shape = 'f32[1]{0:T(128)S(6)}', space=smem, size = 0x200, scoped, tag = 'scoped memory for story_sum_forward.1']
  %s0 = inlined_call_operand.vmem [shape: bf16[256,384], index: 0, kind: input, shape index: {}]
  %s1 = inlined_call_operand.vmem [shape: bf16[384,128], index: 1, kind: input, shape index: {}]
  %s2 = inlined_call_operand.vmem [shape: f32[1,128], index: 2, kind: input, shape index: {}]
  %s3 = inlined_call_operand.vmem [shape: bf16[128,64], index: 3, kind: input, shape index: {}]
  %s4 = inlined_call_operand.vmem [shape: f32[1,64], index: 4, kind: input, shape index: {}]
  %s5 = inlined_call_operand.vmem [shape: f32[1,64], index: 5, kind: input, shape index: {}]
  %s6 = inlined_call_operand.<no memory space> [shape: f32[1], index: 6, kind: input, shape index: {}]
  %s7 = inlined_call_operand.vmem [shape: f32[256,1], index: 7, kind: output, shape index: {}]
  %s8 = sld [smem:[#allocation0]]
  $region38: #{story_sum_forward.1} parent=0
    _
  %s10 = ssub.s32 1, %s8
  %s11 = scalar_select 0, %s10, %s8
  %12 = sst [smem:[#allocation2]] %s6
  // Predicated region
  $region2: #{story_sum_forward.1} parent=0 // pred_check
    _
  $region3: #{story_sum_forward.1} parent=0 // pred_check_branch
    %14 = sbr.rel (0) target = $region5
  $region4: #{story_sum_forward.1} parent=0 // pred_region
    _
  $region5: #{story_sum_forward.1} parent=0 // pred_fallthru
    _
  // Predicated region
  $region6: #{story_sum_forward.1} parent=0 // pred_check
    _
  $region7: #{story_sum_forward.1} parent=0 // pred_check_branch
    %16 = sbr.rel (0) target = $region9
  $region8: #{story_sum_forward.1} parent=0 // pred_region
    _
  $region9: #{story_sum_forward.1} parent=0 // pred_fallthru
    _
  // Predicated region
  $region10: #{story_sum_forward.1} parent=0 // pred_check
    _
  $region11: #{story_sum_forward.1} parent=0 // pred_check_branch
    %18 = sbr.rel (0) target = $region13
  $region12: #{story_sum_forward.1} parent=0 // pred_region
    _
  $region13: #{story_sum_forward.1} parent=0 // pred_fallthru
    _
  // Predicated region
  $region14: #{story_sum_forward.1} parent=0 // pred_check
    _
  $region15: #{story_sum_forward.1} parent=0 // pred_check_branch
    %20 = sbr.rel (0) target = $region17
  $region16: #{story_sum_forward.1} parent=0 // pred_region
    _
  $region17: #{story_sum_forward.1} parent=0 // pred_fallthru
    _
  // Predicated region
  $region18: #{story_sum_forward.1} parent=0 // pred_check
    _
  $region19: #{story_sum_forward.1} parent=0 // pred_check_branch
    %22 = sbr.rel (0) target = $region21
  $region20: #{story_sum_forward.1} parent=0 // pred_region
    _
  $region21: #{story_sum_forward.1} parent=0 // pred_fallthru
    _
  // Predicated region
  $region22: #{story_sum_forward.1} parent=0 // pred_check
    _
  $region23: #{story_sum_forward.1} parent=0 // pred_check_branch
    %24 = sbr.rel (0) target = $region25
  $region24: #{story_sum_forward.1} parent=0 // pred_region
    _
  $region25: #{story_sum_forward.1} parent=0 // pred_fallthru
    _
  // Predicated region
  $region26: #{story_sum_forward.1} parent=0 // pred_check
    _
  $region27: #{story_sum_forward.1} parent=0 // pred_check_branch
    %26 = sbr.rel (0) target = $region29
  $region28: #{story_sum_forward.1} parent=0 // pred_region
    _
  $region29: #{story_sum_forward.1} parent=0 // pred_fallthru
    _
  %v28 = vld [vmem:[%s0] sm:$0xff]
  %v29 = vld [vmem:[%s0 + $0x8] sm:$0xf]
  %v30 = vld [vmem:[%s0 + $0xc] sm:$0xff]
  %v31 = vld [vmem:[%s0 + $0x14] sm:$0xf]
  %v32 = vld [vmem:[%s0 + $0x18] sm:$0xff]
  %v33 = vld [vmem:[%s0 + $0x20] sm:$0xf]
  %v34 = vld [vmem:[%s0 + $0x24] sm:$0xff]
  %v35 = vld [vmem:[%s0 + $0x2c] sm:$0xf]
  %v36 = vld [vmem:[%s0 + $0x30] sm:$0xff]
  %v37 = vld [vmem:[%s0 + $0x38] sm:$0xf]
  %v38 = vld [vmem:[%s0 + $0x3c] sm:$0xff]
  %v39 = vld [vmem:[%s0 + $0x44] sm:$0xf]
  %v40 = vld [vmem:[%s0 + $0x48] sm:$0xff]
  %v41 = vld [vmem:[%s0 + $0x50] sm:$0xf]
  %v42 = vld [vmem:[%s0 + $0x54] sm:$0xff]
  %v43 = vld [vmem:[%s0 + $0x5c] sm:$0xf]
  %v44 = vld [vmem:[%s0 + $0x60] sm:$0xff]
  %v45 = vld [vmem:[%s0 + $0x68] sm:$0xf]
  %v46 = vld [vmem:[%s0 + $0x6c] sm:$0xff]
  %v47 = vld [vmem:[%s0 + $0x74] sm:$0xf]
  %v48 = vld [vmem:[%s0 + $0x78] sm:$0xff]
  %v49 = vld [vmem:[%s0 + $0x80] sm:$0xf]
  %v50 = vld [vmem:[%s0 + $0x84] sm:$0xff]
  %v51 = vld [vmem:[%s0 + $0x8c] sm:$0xf]
  %v52 = vld [vmem:[%s0 + $0x90] sm:$0xff]
  %v53 = vld [vmem:[%s0 + $0x98] sm:$0xf]
  %v54 = vld [vmem:[%s0 + $0x9c] sm:$0xff]
  %v55 = vld [vmem:[%s0 + $0xa4] sm:$0xf]
  %v56 = vld [vmem:[%s0 + $0xa8] sm:$0xff]
  %v57 = vld [vmem:[%s0 + $0xb0] sm:$0xf]
  %v58 = vld [vmem:[%s0 + $0xb4] sm:$0xff]
  %v59 = vld [vmem:[%s0 + $0xbc] sm:$0xf]
  %v60 = vld [vmem:[%s0 + $0xc0] sm:$0xff]
  %v61 = vld [vmem:[%s0 + $0xc8] sm:$0xf]
  %v62 = vld [vmem:[%s0 + $0xcc] sm:$0xff]
  %v63 = vld [vmem:[%s0 + $0xd4] sm:$0xf]
  %v64 = vld [vmem:[%s0 + $0xd8] sm:$0xff]
  %v65 = vld [vmem:[%s0 + $0xe0] sm:$0xf]
  %v66 = vld [vmem:[%s0 + $0xe4] sm:$0xff]
  %v67 = vld [vmem:[%s0 + $0xec] sm:$0xf]
  %v68 = vld [vmem:[%s0 + $0xf0] sm:$0xff]
  %v69 = vld [vmem:[%s0 + $0xf8] sm:$0xf]
  %v70 = vld [vmem:[%s0 + $0xfc] sm:$0xff]
  %v71 = vld [vmem:[%s0 + $0x104] sm:$0xf]
  %v72 = vld [vmem:[%s0 + $0x108] sm:$0xff]
  %v73 = vld [vmem:[%s0 + $0x110] sm:$0xf]
  %v74 = vld [vmem:[%s0 + $0x114] sm:$0xff]
  %v75 = vld [vmem:[%s0 + $0x11c] sm:$0xf]
  %v76 = vld [vmem:[%s0 + $0x120] sm:$0xff]
  %v77 = vld [vmem:[%s0 + $0x128] sm:$0xf]
  %v78 = vld [vmem:[%s0 + $0x12c] sm:$0xff]
  %v79 = vld [vmem:[%s0 + $0x134] sm:$0xf]
  %v80 = vld [vmem:[%s0 + $0x138] sm:$0xff]
  %v81 = vld [vmem:[%s0 + $0x140] sm:$0xf]
  %v82 = vld [vmem:[%s0 + $0x144] sm:$0xff]
  %v83 = vld [vmem:[%s0 + $0x14c] sm:$0xf]
  %v84 = vld [vmem:[%s0 + $0x150] sm:$0xff]
  %v85 = vld [vmem:[%s0 + $0x158] sm:$0xf]
  %v86 = vld [vmem:[%s0 + $0x15c] sm:$0xff]
  %v87 = vld [vmem:[%s0 + $0x164] sm:$0xf]
  %v88 = vld [vmem:[%s0 + $0x168] sm:$0xff]
  %v89 = vld [vmem:[%s0 + $0x170] sm:$0xf]
  %v90 = vld [vmem:[%s0 + $0x174] sm:$0xff]
  %v91 = vld [vmem:[%s0 + $0x17c] sm:$0xf]
  %v92 = vld [vmem:[%s1] sm:$0xf]
  %v93 = vld [vmem:[%s1 + $0x4] sm:$0xf]
  %v94 = vld [vmem:[%s1 + $0x8] sm:$0xf]
  %v95 = vld [vmem:[%s1 + $0xc] sm:$0xf]
  %v96 = vld [vmem:[%s1 + $0x10] sm:$0xf]
  %v97 = vld [vmem:[%s1 + $0x14] sm:$0xf]
  %v98 = vld [vmem:[%s1 + $0x18] sm:$0xf]
  %v99 = vld [vmem:[%s1 + $0x1c] sm:$0xf]
  %v100 = vld [vmem:[%s1 + $0x20] sm:$0xf]
  %v101 = vld [vmem:[%s1 + $0x24] sm:$0xf]
  %v102 = vld [vmem:[%s1 + $0x28] sm:$0xf]
  %v103 = vld [vmem:[%s1 + $0x2c] sm:$0xf]
  %v104 = vld [vmem:[%s1 + $0x30] sm:$0xf]
  %v105 = vld [vmem:[%s1 + $0x34] sm:$0xf]
  %v106 = vld [vmem:[%s1 + $0x38] sm:$0xf]
  %v107 = vld [vmem:[%s1 + $0x3c] sm:$0xf]
  %v108 = vld [vmem:[%s1 + $0x40] sm:$0xf]
  %v109 = vld [vmem:[%s1 + $0x44] sm:$0xf]
  %v110 = vld [vmem:[%s1 + $0x48] sm:$0xf]
  %v111 = vld [vmem:[%s1 + $0x4c] sm:$0xf]
  %v112 = vld [vmem:[%s1 + $0x50] sm:$0xf]
  %v113 = vld [vmem:[%s1 + $0x54] sm:$0xf]
  %v114 = vld [vmem:[%s1 + $0x58] sm:$0xf]
  %v115 = vld [vmem:[%s1 + $0x5c] sm:$0xf]
  %v116 = vld [vmem:[%s1 + $0x60] sm:$0xf]
  %v117 = vld [vmem:[%s1 + $0x64] sm:$0xf]
  %v118 = vld [vmem:[%s1 + $0x68] sm:$0xf]
  %v119 = vld [vmem:[%s1 + $0x6c] sm:$0xf]
  %v120 = vld [vmem:[%s1 + $0x70] sm:$0xf]
  %v121 = vld [vmem:[%s1 + $0x74] sm:$0xf]
  %v122 = vld [vmem:[%s1 + $0x78] sm:$0xf]
  %v123 = vld [vmem:[%s1 + $0x7c] sm:$0xf]
  %v124 = vld [vmem:[%s1 + $0x80] sm:$0xf]
  %v125 = vld [vmem:[%s1 + $0x84] sm:$0xf]
  %v126 = vld [vmem:[%s1 + $0x88] sm:$0xf]
  %v127 = vld [vmem:[%s1 + $0x8c] sm:$0xf]
  %v128 = vld [vmem:[%s1 + $0x90] sm:$0xf]
  %v129 = vld [vmem:[%s1 + $0x94] sm:$0xf]
  %v130 = vld [vmem:[%s1 + $0x98] sm:$0xf]
  %v131 = vld [vmem:[%s1 + $0x9c] sm:$0xf]
  %v132 = vld [vmem:[%s1 + $0xa0] sm:$0xf]
  %v133 = vld [vmem:[%s1 + $0xa4] sm:$0xf]
  %v134 = vld [vmem:[%s1 + $0xa8] sm:$0xf]
  %v135 = vld [vmem:[%s1 + $0xac] sm:$0xf]
  %v136 = vld [vmem:[%s1 + $0xb0] sm:$0xf]
  %v137 = vld [vmem:[%s1 + $0xb4] sm:$0xf]
  %v138 = vld [vmem:[%s1 + $0xb8] sm:$0xf]
  %v139 = vld [vmem:[%s1 + $0xbc] sm:$0xf]
  %v140 = vld [vmem:[%s2] sm:$0x1]
  %v142 = vlaneseq
  %v143 = vshrl.u32 %v142, 7
  %v144 = vsub.s32 0, %v143
  %v145 = vrot.slane %v140, %v144
  %v211 = vunpack.c.l.b16 %v28
  %v212 = vunpack.c.h.b16 %v28
  %v213 = vunpack.c.l.b16 %v29
  %v214 = vunpack.c.l.b16 %v30
  %v215 = vunpack.c.h.b16 %v30
  %v216 = vunpack.c.l.b16 %v31
  %v217 = vunpack.c.l.b16 %v32
  %v218 = vunpack.c.h.b16 %v32
  %v219 = vunpack.c.l.b16 %v33
  %v220 = vunpack.c.l.b16 %v34
  %v221 = vunpack.c.h.b16 %v34
  %v222 = vunpack.c.l.b16 %v35
  %v223 = vunpack.c.l.b16 %v36
  %v224 = vunpack.c.h.b16 %v36
  %v225 = vunpack.c.l.b16 %v37
  %v226 = vunpack.c.l.b16 %v38
  %v227 = vunpack.c.h.b16 %v38
  %v228 = vunpack.c.l.b16 %v39
  %v229 = vunpack.c.l.b16 %v40
  %v230 = vunpack.c.h.b16 %v40
  %v231 = vunpack.c.l.b16 %v41
  %v232 = vunpack.c.l.b16 %v42
  %v233 = vunpack.c.h.b16 %v42
  %v234 = vunpack.c.l.b16 %v43
  %v235 = vunpack.c.l.b16 %v44
  %v236 = vunpack.c.h.b16 %v44
  %v237 = vunpack.c.l.b16 %v45
  %v238 = vunpack.c.l.b16 %v46
  %v239 = vunpack.c.h.b16 %v46
  %v240 = vunpack.c.l.b16 %v47
  %v241 = vunpack.c.l.b16 %v48
  %v242 = vunpack.c.h.b16 %v48
  %v243 = vunpack.c.l.b16 %v49
  %v244 = vunpack.c.l.b16 %v50
  %v245 = vunpack.c.h.b16 %v50
  %v246 = vunpack.c.l.b16 %v51
  %v247 = vunpack.c.l.b16 %v52
  %v248 = vunpack.c.h.b16 %v52
  %v249 = vunpack.c.l.b16 %v53
  %v250 = vunpack.c.l.b16 %v54
  %v251 = vunpack.c.h.b16 %v54
  %v252 = vunpack.c.l.b16 %v55
  %v253 = vunpack.c.l.b16 %v56
  %v254 = vunpack.c.h.b16 %v56
  %v255 = vunpack.c.l.b16 %v57
  %v256 = vunpack.c.l.b16 %v58
  %v257 = vunpack.c.h.b16 %v58
  %v258 = vunpack.c.l.b16 %v59
  %v259 = vunpack.c.l.b16 %v60
  %v260 = vunpack.c.h.b16 %v60
  %v261 = vunpack.c.l.b16 %v61
  %v262 = vunpack.c.l.b16 %v62
  %v263 = vunpack.c.h.b16 %v62
  %v264 = vunpack.c.l.b16 %v63
  %v265 = vunpack.c.l.b16 %v64
  %v266 = vunpack.c.h.b16 %v64
  %v267 = vunpack.c.l.b16 %v65
  %v268 = vunpack.c.l.b16 %v66
  %v269 = vunpack.c.h.b16 %v66
  %v270 = vunpack.c.l.b16 %v67
  %v271 = vunpack.c.l.b16 %v68
  %v272 = vunpack.c.h.b16 %v68
  %v273 = vunpack.c.l.b16 %v69
  %v274 = vunpack.c.l.b16 %v70
  %v275 = vunpack.c.h.b16 %v70
  %v276 = vunpack.c.l.b16 %v71
  %v277 = vunpack.c.l.b16 %v72
  %v278 = vunpack.c.h.b16 %v72
  %v279 = vunpack.c.l.b16 %v73
  %v280 = vunpack.c.l.b16 %v74
  %v281 = vunpack.c.h.b16 %v74
  %v282 = vunpack.c.l.b16 %v75
  %v283 = vunpack.c.l.b16 %v76
  %v284 = vunpack.c.h.b16 %v76
  %v285 = vunpack.c.l.b16 %v77
  %v286 = vunpack.c.l.b16 %v78
  %v287 = vunpack.c.h.b16 %v78
  %v288 = vunpack.c.l.b16 %v79
  %v289 = vunpack.c.l.b16 %v80
  %v290 = vunpack.c.h.b16 %v80
  %v291 = vunpack.c.l.b16 %v81
  %v292 = vunpack.c.l.b16 %v82
  %v293 = vunpack.c.h.b16 %v82
  %v294 = vunpack.c.l.b16 %v83
  %v295 = vunpack.c.l.b16 %v84
  %v296 = vunpack.c.h.b16 %v84
  %v297 = vunpack.c.l.b16 %v85
  %v298 = vunpack.c.l.b16 %v86
  %v299 = vunpack.c.h.b16 %v86
  %v300 = vunpack.c.l.b16 %v87
  %v301 = vunpack.c.l.b16 %v88
  %v302 = vunpack.c.h.b16 %v88
  %v303 = vunpack.c.l.b16 %v89
  %v304 = vunpack.c.l.b16 %v90
  %v305 = vunpack.c.h.b16 %v90
  %v306 = vunpack.c.l.b16 %v91
  %v307 = vpack.c.b16 %v214, %v211
  %v308 = vpack.c.b16 %v215, %v212
  %v309 = vpack.c.b16 %v216, %v213
  %v310 = vpack.c.b16 %v220, %v217
  %v311 = vpack.c.b16 %v221, %v218
  %v312 = vpack.c.b16 %v222, %v219
  %v313 = vpack.c.b16 %v226, %v223
  %v314 = vpack.c.b16 %v227, %v224
  %v315 = vpack.c.b16 %v228, %v225
  %v316 = vpack.c.b16 %v232, %v229
  %v317 = vpack.c.b16 %v233, %v230
  %v318 = vpack.c.b16 %v234, %v231
  %v319 = vpack.c.b16 %v238, %v235
  %v320 = vpack.c.b16 %v239, %v236
  %v321 = vpack.c.b16 %v240, %v237
  %v322 = vpack.c.b16 %v244, %v241
  %v323 = vpack.c.b16 %v245, %v242
  %v324 = vpack.c.b16 %v246, %v243
  %v325 = vpack.c.b16 %v250, %v247
  %v326 = vpack.c.b16 %v251, %v248
  %v327 = vpack.c.b16 %v252, %v249
  %v328 = vpack.c.b16 %v256, %v253
  %v329 = vpack.c.b16 %v257, %v254
  %v330 = vpack.c.b16 %v258, %v255
  %v331 = vpack.c.b16 %v262, %v259
  %v332 = vpack.c.b16 %v263, %v260
  %v333 = vpack.c.b16 %v264, %v261
  %v334 = vpack.c.b16 %v268, %v265
  %v335 = vpack.c.b16 %v269, %v266
  %v336 = vpack.c.b16 %v270, %v267
  %v337 = vpack.c.b16 %v274, %v271
  %v338 = vpack.c.b16 %v275, %v272
  %v339 = vpack.c.b16 %v276, %v273
  %v340 = vpack.c.b16 %v280, %v277
  %v341 = vpack.c.b16 %v281, %v278
  %v342 = vpack.c.b16 %v282, %v279
  %v343 = vpack.c.b16 %v286, %v283
  %v344 = vpack.c.b16 %v287, %v284
  %v345 = vpack.c.b16 %v288, %v285
  %v346 = vpack.c.b16 %v292, %v289
  %v347 = vpack.c.b16 %v293, %v290
  %v348 = vpack.c.b16 %v294, %v291
  %v349 = vpack.c.b16 %v298, %v295
  %v350 = vpack.c.b16 %v299, %v296
  %v351 = vpack.c.b16 %v300, %v297
  %v352 = vpack.c.b16 %v304, %v301
  %v353 = vpack.c.b16 %v305, %v302
  %v354 = vpack.c.b16 %v306, %v303
  %v451 = vunpack.c.l.b16 %v92
  %v452 = vunpack.c.l.b16 %v93
  %v453 = vunpack.c.l.b16 %v94
  %v454 = vunpack.c.l.b16 %v95
  %v455 = vunpack.c.l.b16 %v96
  %v456 = vunpack.c.l.b16 %v97
  %v457 = vunpack.c.l.b16 %v98
  %v458 = vunpack.c.l.b16 %v99
  %v459 = vunpack.c.l.b16 %v100
  %v460 = vunpack.c.l.b16 %v101
  %v461 = vunpack.c.l.b16 %v102
  %v462 = vunpack.c.l.b16 %v103
  %v463 = vunpack.c.l.b16 %v104
  %v464 = vunpack.c.l.b16 %v105
  %v465 = vunpack.c.l.b16 %v106
  %v466 = vunpack.c.l.b16 %v107
  %v467 = vunpack.c.l.b16 %v108
  %v468 = vunpack.c.l.b16 %v109
  %v469 = vunpack.c.l.b16 %v110
  %v470 = vunpack.c.l.b16 %v111
  %v471 = vunpack.c.l.b16 %v112
  %v472 = vunpack.c.l.b16 %v113
  %v473 = vunpack.c.l.b16 %v114
  %v474 = vunpack.c.l.b16 %v115
  %v475 = vunpack.c.l.b16 %v116
  %v476 = vunpack.c.l.b16 %v117
  %v477 = vunpack.c.l.b16 %v118
  %v478 = vunpack.c.l.b16 %v119
  %v479 = vunpack.c.l.b16 %v120
  %v480 = vunpack.c.l.b16 %v121
  %v481 = vunpack.c.l.b16 %v122
  %v482 = vunpack.c.l.b16 %v123
  %v483 = vunpack.c.l.b16 %v124
  %v484 = vunpack.c.l.b16 %v125
  %v485 = vunpack.c.l.b16 %v126
  %v486 = vunpack.c.l.b16 %v127
  %v487 = vunpack.c.l.b16 %v128
  %v488 = vunpack.c.l.b16 %v129
  %v489 = vunpack.c.l.b16 %v130
  %v490 = vunpack.c.l.b16 %v131
  %v491 = vunpack.c.l.b16 %v132
  %v492 = vunpack.c.l.b16 %v133
  %v493 = vunpack.c.l.b16 %v134
  %v494 = vunpack.c.l.b16 %v135
  %v495 = vunpack.c.l.b16 %v136
  %v496 = vunpack.c.l.b16 %v137
  %v497 = vunpack.c.l.b16 %v138
  %v498 = vunpack.c.l.b16 %v139
  %v499 = vpack.c.b16 %v452, %v451
  %v500 = vpack.c.b16 %v454, %v453
  %v501 = vpack.c.b16 %v456, %v455
  %v502 = vpack.c.b16 %v458, %v457
  %v503 = vpack.c.b16 %v460, %v459
  %v504 = vpack.c.b16 %v462, %v461
  %v505 = vpack.c.b16 %v464, %v463
  %v506 = vpack.c.b16 %v466, %v465
  %v507 = vpack.c.b16 %v468, %v467
  %v508 = vpack.c.b16 %v470, %v469
  %v509 = vpack.c.b16 %v472, %v471
  %v510 = vpack.c.b16 %v474, %v473
  %v511 = vpack.c.b16 %v476, %v475
  %v512 = vpack.c.b16 %v478, %v477
  %v513 = vpack.c.b16 %v480, %v479
  %v514 = vpack.c.b16 %v482, %v481
  %v515 = vpack.c.b16 %v484, %v483
  %v516 = vpack.c.b16 %v486, %v485
  %v517 = vpack.c.b16 %v488, %v487
  %v518 = vpack.c.b16 %v490, %v489
  %v519 = vpack.c.b16 %v492, %v491
  %v520 = vpack.c.b16 %v494, %v493
  %v521 = vpack.c.b16 %v496, %v495
  %v522 = vpack.c.b16 %v498, %v497
  %547 = vmatprep.subr.bf16.mxu0 0
  %548 = vmatpush1.bf16.msra.mxu0 %v499
  %549 = vmatprep.subr.bf16.mxu0 0
  %550 = vmatpush1.bf16.msra.mxu0 %v500
  %551 = vmatprep.subr.bf16.mxu0 0
  %552 = vmatpush1.bf16.msra.mxu0 %v501
  %553 = vmatprep.subr.bf16.mxu0 0
  %554 = vmatpush1.bf16.msra.mxu0 %v502
  %555 = vmatprep.subr.bf16.mxu0 0
  %556 = vmatpush1.bf16.msra.mxu0 %v503
  %557 = vmatprep.subr.bf16.mxu0 0
  %558 = vmatpush1.bf16.msra.mxu0 %v504
  %559 = vmatprep.subr.bf16.mxu0 0
  %560 = vmatpush1.bf16.msra.mxu0 %v505
  %561 = vmatprep.subr.bf16.mxu0 0
  %562 = vmatpush1.bf16.msra.mxu0 %v506
  %563 = vmatprep.subr.bf16.mxu0 0
  %564 = vmatpush1.bf16.msra.mxu0 %v507
  %565 = vmatprep.subr.bf16.mxu0 0
  %566 = vmatpush1.bf16.msra.mxu0 %v508
  %567 = vmatprep.subr.bf16.mxu0 0
  %568 = vmatpush1.bf16.msra.mxu0 %v509
  %569 = vmatprep.subr.bf16.mxu0 0
  %570 = vmatpush1.bf16.msra.mxu0 %v510
  %571 = vmatprep.subr.bf16.mxu0 0
  %572 = vmatpush1.bf16.msra.mxu0 %v511
  %573 = vmatprep.subr.bf16.mxu0 0
  %574 = vmatpush1.bf16.msra.mxu0 %v512
  %575 = vmatprep.subr.bf16.mxu0 0
  %576 = vmatpush1.bf16.msra.mxu0 %v513
  %577 = vmatprep.subr.bf16.mxu0 0
  %578 = vmatpush1.bf16.msra.mxu0 %v514
  %579 = vmatprep.mubr.bf16.mxu0 %v308
  %580 = vmatmul.mubr.bf16.gmra.mrb[0].mxu0 %v307
  %v581 = vpop.f32.mrb[0].mxu0
  %v582 = vadd.f32 %v145, %v581
  %v583 = vpop.f32.mrb[0].mxu0
  %v584 = vpop.f32.mrb[0].mxu0
  %v585 = vadd.f32 %v145, %v584
  %v586 = vpop.f32.mrb[0].mxu0
  %587 = vmatprep.mubr.bf16.mxu0 %v311
  %588 = vmatmul.mubr.bf16.gmra.mrb[0].mxu0 %v310
  %v589 = vpop.f32.mrb[0].mxu0
  %v590 = vadd.f32 %v145, %v589
  %v591 = vpop.f32.mrb[0].mxu0
  %v592 = vpop.f32.mrb[0].mxu0
  %v593 = vadd.f32 %v145, %v592
  %v594 = vpop.f32.mrb[0].mxu0
  %595 = vmatprep.mubr.bf16.mxu0 %v314
  %596 = vmatmul.mubr.bf16.gmra.mrb[0].mxu0 %v313
  %v597 = vpop.f32.mrb[0].mxu0
  %v598 = vadd.f32 %v145, %v597
  %v599 = vpop.f32.mrb[0].mxu0
  %v600 = vpop.f32.mrb[0].mxu0
  %v601 = vadd.f32 %v145, %v600
  %v602 = vpop.f32.mrb[0].mxu0
  %603 = vmatprep.mubr.bf16.mxu0 %v317
  %604 = vmatmul.mubr.bf16.gmra.mrb[0].mxu0 %v316
  %v605 = vpop.f32.mrb[0].mxu0
  %v606 = vadd.f32 %v145, %v605
  %v607 = vpop.f32.mrb[0].mxu0
  %v608 = vpop.f32.mrb[0].mxu0
  %v609 = vadd.f32 %v145, %v608
  %v610 = vpop.f32.mrb[0].mxu0
  %611 = vmatprep.mubr.bf16.mxu0 %v320
  %612 = vmatmul.mubr.bf16.gmra.mrb[0].mxu0 %v319
  %v613 = vpop.f32.mrb[0].mxu0
  %v614 = vadd.f32 %v145, %v613
  %v615 = vpop.f32.mrb[0].mxu0
  %v616 = vpop.f32.mrb[0].mxu0
  %v617 = vadd.f32 %v145, %v616
  %v618 = vpop.f32.mrb[0].mxu0
  %619 = vmatprep.mubr.bf16.mxu0 %v323
  %620 = vmatmul.mubr.bf16.gmra.mrb[0].mxu0 %v322
  %v621 = vpop.f32.mrb[0].mxu0
  %v622 = vadd.f32 %v145, %v621
  %v623 = vpop.f32.mrb[0].mxu0
  %v624 = vpop.f32.mrb[0].mxu0
  %v625 = vadd.f32 %v145, %v624
  %v626 = vpop.f32.mrb[0].mxu0
  %627 = vmatprep.mubr.bf16.mxu0 %v326
  %628 = vmatmul.mubr.bf16.gmra.mrb[0].mxu0 %v325
  %v629 = vpop.f32.mrb[0].mxu0
  %v630 = vadd.f32 %v145, %v629
  %v631 = vpop.f32.mrb[0].mxu0
  %v632 = vpop.f32.mrb[0].mxu0
  %v633 = vadd.f32 %v145, %v632
  %v634 = vpop.f32.mrb[0].mxu0
  %635 = vmatprep.mubr.bf16.mxu0 %v329
  %636 = vmatmul.mubr.bf16.gmra.mrb[0].mxu0 %v328
  %v637 = vpop.f32.mrb[0].mxu0
  %v638 = vadd.f32 %v145, %v637
  %v639 = vpop.f32.mrb[0].mxu0
  %v640 = vpop.f32.mrb[0].mxu0
  %v641 = vadd.f32 %v145, %v640
  %v642 = vpop.f32.mrb[0].mxu0
  %643 = vmatprep.mubr.bf16.mxu0 %v332
  %644 = vmatmul.mubr.bf16.gmra.mrb[0].mxu0 %v331
  %v645 = vpop.f32.mrb[0].mxu0
  %v646 = vadd.f32 %v145, %v645
  %v647 = vpop.f32.mrb[0].mxu0
  %v648 = vpop.f32.mrb[0].mxu0
  %v649 = vadd.f32 %v145, %v648
  %v650 = vpop.f32.mrb[0].mxu0
  %651 = vmatprep.mubr.bf16.mxu0 %v335
  %652 = vmatmul.mubr.bf16.gmra.mrb[0].mxu0 %v334
  %v653 = vpop.f32.mrb[0].mxu0
  %v654 = vadd.f32 %v145, %v653
  %v655 = vpop.f32.mrb[0].mxu0
  %v656 = vpop.f32.mrb[0].mxu0
  %v657 = vadd.f32 %v145, %v656
  %v658 = vpop.f32.mrb[0].mxu0
  %659 = vmatprep.mubr.bf16.mxu0 %v338
  %660 = vmatmul.mubr.bf16.gmra.mrb[0].mxu0 %v337
  %v661 = vpop.f32.mrb[0].mxu0
  %v662 = vadd.f32 %v145, %v661
  %v663 = vpop.f32.mrb[0].mxu0
  %v664 = vpop.f32.mrb[0].mxu0
  %v665 = vadd.f32 %v145, %v664
  %v666 = vpop.f32.mrb[0].mxu0
  %667 = vmatprep.mubr.bf16.mxu0 %v341
  %668 = vmatmul.mubr.bf16.gmra.mrb[0].mxu0 %v340
  %v669 = vpop.f32.mrb[0].mxu0
  %v670 = vadd.f32 %v145, %v669
  %v671 = vpop.f32.mrb[0].mxu0
  %v672 = vpop.f32.mrb[0].mxu0
  %v673 = vadd.f32 %v145, %v672
  %v674 = vpop.f32.mrb[0].mxu0
  %675 = vmatprep.mubr.bf16.mxu0 %v344
  %676 = vmatmul.mubr.bf16.gmra.mrb[0].mxu0 %v343
  %v677 = vpop.f32.mrb[0].mxu0
  %v678 = vadd.f32 %v145, %v677
  %v679 = vpop.f32.mrb[0].mxu0
  %v680 = vpop.f32.mrb[0].mxu0
  %v681 = vadd.f32 %v145, %v680
  %v682 = vpop.f32.mrb[0].mxu0
  %683 = vmatprep.mubr.bf16.mxu0 %v347
  %684 = vmatmul.mubr.bf16.gmra.mrb[0].mxu0 %v346
  %v685 = vpop.f32.mrb[0].mxu0
  %v686 = vadd.f32 %v145, %v685
  %v687 = vpop.f32.mrb[0].mxu0
  %v688 = vpop.f32.mrb[0].mxu0
  %v689 = vadd.f32 %v145, %v688
  %v690 = vpop.f32.mrb[0].mxu0
  %691 = vmatprep.mubr.bf16.mxu0 %v350
  %692 = vmatmul.mubr.bf16.gmra.mrb[0].mxu0 %v349
  %v693 = vpop.f32.mrb[0].mxu0
  %v694 = vadd.f32 %v145, %v693
  %v695 = vpop.f32.mrb[0].mxu0
  %v696 = vpop.f32.mrb[0].mxu0
  %v697 = vadd.f32 %v145, %v696
  %v698 = vpop.f32.mrb[0].mxu0
  %699 = vmatprep.mubr.bf16.mxu0 %v353
  %700 = vmatmul.mubr.bf16.gmra.mrb[0].mxu0 %v352
  %v701 = vpop.f32.mrb[0].mxu0
  %v702 = vadd.f32 %v145, %v701
  %v703 = vpop.f32.mrb[0].mxu0
  %v704 = vpop.f32.mrb[0].mxu0
  %v705 = vadd.f32 %v145, %v704
  %v706 = vpop.f32.mrb[0].mxu0
  %707 = vdwg.mxu0
  %708 = vmatprep.subr.bf16.mxu0 0
  %709 = vmatpush1.bf16.msra.mxu0 %v515
  %710 = vmatprep.subr.bf16.mxu0 0
  %711 = vmatpush1.bf16.msra.mxu0 %v516
  %712 = vmatprep.subr.bf16.mxu0 0
  %713 = vmatpush1.bf16.msra.mxu0 %v517
  %714 = vmatprep.subr.bf16.mxu0 0
  %715 = vmatpush1.bf16.msra.mxu0 %v518
  %716 = vmatprep.subr.bf16.mxu0 0
  %717 = vmatpush1.bf16.msra.mxu0 %v519
  %718 = vmatprep.subr.bf16.mxu0 0
  %719 = vmatpush1.bf16.msra.mxu0 %v520
  %720 = vmatprep.subr.bf16.mxu0 0
  %721 = vmatpush1.bf16.msra.mxu0 %v521
  %722 = vmatprep.subr.bf16.mxu0 0
  %723 = vmatpush1.bf16.msra.mxu0 %v522
  %724 = vmatprep.subr.bf16.mxu0 0
  %725 = vmatpush1.bf16.msra.mxu0 0
  %726 = vmatprep.subr.bf16.mxu0 0
  %727 = vmatpush1.bf16.msra.mxu0 0
  %728 = vmatprep.subr.bf16.mxu0 0
  %729 = vmatpush1.bf16.msra.mxu0 0
  %730 = vmatprep.subr.bf16.mxu0 0
  %731 = vmatpush1.bf16.msra.mxu0 0
  %732 = vmatprep.subr.bf16.mxu0 0
  %733 = vmatpush1.bf16.msra.mxu0 0
  %734 = vmatprep.subr.bf16.mxu0 0
  %735 = vmatpush1.bf16.msra.mxu0 0
  %736 = vmatprep.subr.bf16.mxu0 0
  %737 = vmatpush1.bf16.msra.mxu0 0
  %738 = vmatprep.subr.bf16.mxu0 0
  %739 = vmatpush1.bf16.msra.mxu0 0
  %740 = vmatprep.mubr.bf16.mxu0 0
  %741 = vmatmul.mubr.bf16.gmra.mrb[0].mxu0 %v309
  %v742 = vpop.f32.mrb[0].mxu0
  %v743 = vadd.f32 %v582, %v742
  %v744 = vpop.f32.mrb[0].mxu0
  %v745 = vpop.f32.mrb[0].mxu0
  %v746 = vadd.f32 %v585, %v745
  %v747 = vpop.f32.mrb[0].mxu0
  %748 = vmatprep.mubr.bf16.mxu0 0
  %749 = vmatmul.mubr.bf16.gmra.mrb[0].mxu0 %v312
  %v750 = vpop.f32.mrb[0].mxu0
  %v751 = vadd.f32 %v590, %v750
  %v752 = vpop.f32.mrb[0].mxu0
  %v753 = vpop.f32.mrb[0].mxu0
  %v754 = vadd.f32 %v593, %v753
  %v755 = vpop.f32.mrb[0].mxu0
  %756 = vmatprep.mubr.bf16.mxu0 0
  %757 = vmatmul.mubr.bf16.gmra.mrb[0].mxu0 %v315
  %v758 = vpop.f32.mrb[0].mxu0
  %v759 = vadd.f32 %v598, %v758
  %v760 = vpop.f32.mrb[0].mxu0
  %v761 = vpop.f32.mrb[0].mxu0
  %v762 = vadd.f32 %v601, %v761
  %v763 = vpop.f32.mrb[0].mxu0
  %764 = vmatprep.mubr.bf16.mxu0 0
  %765 = vmatmul.mubr.bf16.gmra.mrb[0].mxu0 %v318
  %v766 = vpop.f32.mrb[0].mxu0
  %v767 = vadd.f32 %v606, %v766
  %v768 = vpop.f32.mrb[0].mxu0
  %v769 = vpop.f32.mrb[0].mxu0
  %v770 = vadd.f32 %v609, %v769
  %v771 = vpop.f32.mrb[0].mxu0
  %772 = vmatprep.mubr.bf16.mxu0 0
  %773 = vmatmul.mubr.bf16.gmra.mrb[0].mxu0 %v321
  %v774 = vpop.f32.mrb[0].mxu0
  %v775 = vadd.f32 %v614, %v774
  %v776 = vpop.f32.mrb[0].mxu0
  %v777 = vpop.f32.mrb[0].mxu0
  %v778 = vadd.f32 %v617, %v777
  %v779 = vpop.f32.mrb[0].mxu0
  %780 = vmatprep.mubr.bf16.mxu0 0
  %781 = vmatmul.mubr.bf16.gmra.mrb[0].mxu0 %v324
  %v782 = vpop.f32.mrb[0].mxu0
  %v783 = vadd.f32 %v622, %v782
  %v784 = vpop.f32.mrb[0].mxu0
  %v785 = vpop.f32.mrb[0].mxu0
  %v786 = vadd.f32 %v625, %v785
  %v787 = vpop.f32.mrb[0].mxu0
  %788 = vmatprep.mubr.bf16.mxu0 0
  %789 = vmatmul.mubr.bf16.gmra.mrb[0].mxu0 %v327
  %v790 = vpop.f32.mrb[0].mxu0
  %v791 = vadd.f32 %v630, %v790
  %v792 = vpop.f32.mrb[0].mxu0
  %v793 = vpop.f32.mrb[0].mxu0
  %v794 = vadd.f32 %v633, %v793
  %v795 = vpop.f32.mrb[0].mxu0
  %796 = vmatprep.mubr.bf16.mxu0 0
  %797 = vmatmul.mubr.bf16.gmra.mrb[0].mxu0 %v330
  %v798 = vpop.f32.mrb[0].mxu0
  %v799 = vadd.f32 %v638, %v798
  %v800 = vpop.f32.mrb[0].mxu0
  %v801 = vpop.f32.mrb[0].mxu0
  %v802 = vadd.f32 %v641, %v801
  %v803 = vpop.f32.mrb[0].mxu0
  %804 = vmatprep.mubr.bf16.mxu0 0
  %805 = vmatmul.mubr.bf16.gmra.mrb[0].mxu0 %v333
  %v806 = vpop.f32.mrb[0].mxu0
  %v807 = vadd.f32 %v646, %v806
  %v808 = vpop.f32.mrb[0].mxu0
  %v809 = vpop.f32.mrb[0].mxu0
  %v810 = vadd.f32 %v649, %v809
  %v811 = vpop.f32.mrb[0].mxu0
  %812 = vmatprep.mubr.bf16.mxu0 0
  %813 = vmatmul.mubr.bf16.gmra.mrb[0].mxu0 %v336
  %v814 = vpop.f32.mrb[0].mxu0
  %v815 = vadd.f32 %v654, %v814
  %v816 = vpop.f32.mrb[0].mxu0
  %v817 = vpop.f32.mrb[0].mxu0
  %v818 = vadd.f32 %v657, %v817
  %v819 = vpop.f32.mrb[0].mxu0
  %820 = vmatprep.mubr.bf16.mxu0 0
  %821 = vmatmul.mubr.bf16.gmra.mrb[0].mxu0 %v339
  %v822 = vpop.f32.mrb[0].mxu0
  %v823 = vadd.f32 %v662, %v822
  %v824 = vpop.f32.mrb[0].mxu0
  %v825 = vpop.f32.mrb[0].mxu0
  %v826 = vadd.f32 %v665, %v825
  %v827 = vpop.f32.mrb[0].mxu0
  %828 = vmatprep.mubr.bf16.mxu0 0
  %829 = vmatmul.mubr.bf16.gmra.mrb[0].mxu0 %v342
  %v830 = vpop.f32.mrb[0].mxu0
  %v831 = vadd.f32 %v670, %v830
  %v832 = vpop.f32.mrb[0].mxu0
  %v833 = vpop.f32.mrb[0].mxu0
  %v834 = vadd.f32 %v673, %v833
  %v835 = vpop.f32.mrb[0].mxu0
  %836 = vmatprep.mubr.bf16.mxu0 0
  %837 = vmatmul.mubr.bf16.gmra.mrb[0].mxu0 %v345
  %v838 = vpop.f32.mrb[0].mxu0
  %v839 = vadd.f32 %v678, %v838
  %v840 = vpop.f32.mrb[0].mxu0
  %v841 = vpop.f32.mrb[0].mxu0
  %v842 = vadd.f32 %v681, %v841
  %v843 = vpop.f32.mrb[0].mxu0
  %844 = vmatprep.mubr.bf16.mxu0 0
  %845 = vmatmul.mubr.bf16.gmra.mrb[0].mxu0 %v348
  %v846 = vpop.f32.mrb[0].mxu0
  %v847 = vadd.f32 %v686, %v846
  %v848 = vpop.f32.mrb[0].mxu0
  %v849 = vpop.f32.mrb[0].mxu0
  %v850 = vadd.f32 %v689, %v849
  %v851 = vpop.f32.mrb[0].mxu0
  %852 = vmatprep.mubr.bf16.mxu0 0
  %853 = vmatmul.mubr.bf16.gmra.mrb[0].mxu0 %v351
  %v854 = vpop.f32.mrb[0].mxu0
  %v855 = vadd.f32 %v694, %v854
  %v856 = vpop.f32.mrb[0].mxu0
  %v857 = vpop.f32.mrb[0].mxu0
  %v858 = vadd.f32 %v697, %v857
  %v859 = vpop.f32.mrb[0].mxu0
  %860 = vmatprep.mubr.bf16.mxu0 0
  %861 = vmatmul.mubr.bf16.gmra.mrb[0].mxu0 %v354
  %v862 = vpop.f32.mrb[0].mxu0
  %v863 = vadd.f32 %v702, %v862
  %v864 = vpop.f32.mrb[0].mxu0
  %v865 = vpop.f32.mrb[0].mxu0
  %v866 = vadd.f32 %v705, %v865
  %v867 = vpop.f32.mrb[0].mxu0
  %868 = vdwg.mxu0
  %v869 = vmax.f32 %v743, 0.0
  %v870 = vmax.f32 %v746, 0.0
  %v871 = vmax.f32 %v751, 0.0
  %v872 = vmax.f32 %v754, 0.0
  %v873 = vmax.f32 %v759, 0.0
  %v874 = vmax.f32 %v762, 0.0
  %v875 = vmax.f32 %v767, 0.0
  %v876 = vmax.f32 %v770, 0.0
  %v877 = vmax.f32 %v775, 0.0
  %v878 = vmax.f32 %v778, 0.0
  %v879 = vmax.f32 %v783, 0.0
  %v880 = vmax.f32 %v786, 0.0
  %v881 = vmax.f32 %v791, 0.0
  %v882 = vmax.f32 %v794, 0.0
  %v883 = vmax.f32 %v799, 0.0
  %v884 = vmax.f32 %v802, 0.0
  %v885 = vmax.f32 %v807, 0.0
  %v886 = vmax.f32 %v810, 0.0
  %v887 = vmax.f32 %v815, 0.0
  %v888 = vmax.f32 %v818, 0.0
  %v889 = vmax.f32 %v823, 0.0
  %v890 = vmax.f32 %v826, 0.0
  %v891 = vmax.f32 %v831, 0.0
  %v892 = vmax.f32 %v834, 0.0
  %v893 = vmax.f32 %v839, 0.0
  %v894 = vmax.f32 %v842, 0.0
  %v895 = vmax.f32 %v847, 0.0
  %v896 = vmax.f32 %v850, 0.0
  %v897 = vmax.f32 %v855, 0.0
  %v898 = vmax.f32 %v858, 0.0
  %v899 = vmax.f32 %v863, 0.0
  %v900 = vmax.f32 %v866, 0.0
  %v901 = vpack.c.bf16 %v870, %v869
  %v902 = vpack.c.bf16 %v872, %v871
  %v903 = vpack.c.bf16 %v874, %v873
  %v904 = vpack.c.bf16 %v876, %v875
  %v905 = vpack.c.bf16 %v878, %v877
  %v906 = vpack.c.bf16 %v880, %v879
  %v907 = vpack.c.bf16 %v882, %v881
  %v908 = vpack.c.bf16 %v884, %v883
  %v909 = vpack.c.bf16 %v886, %v885
  %v910 = vpack.c.bf16 %v888, %v887
  %v911 = vpack.c.bf16 %v890, %v889
  %v912 = vpack.c.bf16 %v892, %v891
  %v913 = vpack.c.bf16 %v894, %v893
  %v914 = vpack.c.bf16 %v896, %v895
  %v915 = vpack.c.bf16 %v898, %v897
  %v916 = vpack.c.bf16 %v900, %v899
  %v917 = vld [vmem:[%s3] sm:$0xf]
  %v918 = vld [vmem:[%s3 + $0x4] sm:$0xf]
  %v919 = vld [vmem:[%s3 + $0x8] sm:$0xf]
  %v920 = vld [vmem:[%s3 + $0xc] sm:$0xf]
  %v921 = vld [vmem:[%s3 + $0x10] sm:$0xf]
  %v922 = vld [vmem:[%s3 + $0x14] sm:$0xf]
  %v923 = vld [vmem:[%s3 + $0x18] sm:$0xf]
  %v924 = vld [vmem:[%s3 + $0x1c] sm:$0xf]
  %v925 = vld [vmem:[%s3 + $0x20] sm:$0xf]
  %v926 = vld [vmem:[%s3 + $0x24] sm:$0xf]
  %v927 = vld [vmem:[%s3 + $0x28] sm:$0xf]
  %v928 = vld [vmem:[%s3 + $0x2c] sm:$0xf]
  %v929 = vld [vmem:[%s3 + $0x30] sm:$0xf]
  %v930 = vld [vmem:[%s3 + $0x34] sm:$0xf]
  %v931 = vld [vmem:[%s3 + $0x38] sm:$0xf]
  %v932 = vld [vmem:[%s3 + $0x3c] sm:$0xf]
  %v933 = vld [vmem:[%s4] sm:$0x1]
  %v935 = vlaneseq
  %v936 = vshrl.u32 %v935, 7
  %v937 = vsub.s32 0, %v936
  %v938 = vrot.slane %v933, %v937
  %v956 = vunpack.c.l.b16 %v917
  %v957 = vunpack.c.l.b16 %v918
  %v958 = vunpack.c.l.b16 %v919
  %v959 = vunpack.c.l.b16 %v920
  %v960 = vunpack.c.l.b16 %v921
  %v961 = vunpack.c.l.b16 %v922
  %v962 = vunpack.c.l.b16 %v923
  %v963 = vunpack.c.l.b16 %v924
  %v964 = vunpack.c.l.b16 %v925
  %v965 = vunpack.c.l.b16 %v926
  %v966 = vunpack.c.l.b16 %v927
  %v967 = vunpack.c.l.b16 %v928
  %v968 = vunpack.c.l.b16 %v929
  %v969 = vunpack.c.l.b16 %v930
  %v970 = vunpack.c.l.b16 %v931
  %v971 = vunpack.c.l.b16 %v932
  %v972 = vpack.c.b16 %v957, %v956
  %v973 = vpack.c.b16 %v959, %v958
  %v974 = vpack.c.b16 %v961, %v960
  %v975 = vpack.c.b16 %v963, %v962
  %v976 = vpack.c.b16 %v965, %v964
  %v977 = vpack.c.b16 %v967, %v966
  %v978 = vpack.c.b16 %v969, %v968
  %v979 = vpack.c.b16 %v971, %v970
  %988 = vmatprep.subr.bf16.mxu0 0
  %989 = vmatpush1.bf16.msra.mxu0 %v972
  %990 = vmatprep.subr.bf16.mxu0 0
  %991 = vmatpush1.bf16.msra.mxu0 %v973
  %992 = vmatprep.subr.bf16.mxu0 0
  %993 = vmatpush1.bf16.msra.mxu0 %v974
  %994 = vmatprep.subr.bf16.mxu0 0
  %995 = vmatpush1.bf16.msra.mxu0 %v975
  %996 = vmatprep.subr.bf16.mxu0 0
  %997 = vmatpush1.bf16.msra.mxu0 %v976
  %998 = vmatprep.subr.bf16.mxu0 0
  %999 = vmatpush1.bf16.msra.mxu0 %v977
  %1000 = vmatprep.subr.bf16.mxu0 0
  %1001 = vmatpush1.bf16.msra.mxu0 %v978
  %1002 = vmatprep.subr.bf16.mxu0 0
  %1003 = vmatpush1.bf16.msra.mxu0 %v979
  %1004 = vmatprep.subr.bf16.mxu0 0
  %1005 = vmatpush1.bf16.msra.mxu0 0
  %1006 = vmatprep.subr.bf16.mxu0 0
  %1007 = vmatpush1.bf16.msra.mxu0 0
  %1008 = vmatprep.subr.bf16.mxu0 0
  %1009 = vmatpush1.bf16.msra.mxu0 0
  %1010 = vmatprep.subr.bf16.mxu0 0
  %1011 = vmatpush1.bf16.msra.mxu0 0
  %1012 = vmatprep.subr.bf16.mxu0 0
  %1013 = vmatpush1.bf16.msra.mxu0 0
  %1014 = vmatprep.subr.bf16.mxu0 0
  %1015 = vmatpush1.bf16.msra.mxu0 0
  %1016 = vmatprep.subr.bf16.mxu0 0
  %1017 = vmatpush1.bf16.msra.mxu0 0
  %1018 = vmatprep.subr.bf16.mxu0 0
  %1019 = vmatpush1.bf16.msra.mxu0 0
  %1020 = vmatprep.mubr.bf16.mxu0 0
  %1021 = vmatmul.mubr.bf16.gmra.mrb[0].mxu0 %v901
  %v1022 = vpop.f32.mrb[0].mxu0
  %v1023 = vadd.f32 %v938, %v1022
  %v1024 = vpop.f32.mrb[0].mxu0
  %v1025 = vpop.f32.mrb[0].mxu0
  %v1026 = vadd.f32 %v938, %v1025
  %v1027 = vpop.f32.mrb[0].mxu0
  %1028 = vmatprep.mubr.bf16.mxu0 0
  %1029 = vmatmul.mubr.bf16.gmra.mrb[0].mxu0 %v902
  %v1030 = vpop.f32.mrb[0].mxu0
  %v1031 = vadd.f32 %v938, %v1030
  %v1032 = vpop.f32.mrb[0].mxu0
  %v1033 = vpop.f32.mrb[0].mxu0
  %v1034 = vadd.f32 %v938, %v1033
  %v1035 = vpop.f32.mrb[0].mxu0
  %1036 = vmatprep.mubr.bf16.mxu0 0
  %1037 = vmatmul.mubr.bf16.gmra.mrb[0].mxu0 %v903
  %v1038 = vpop.f32.mrb[0].mxu0
  %v1039 = vadd.f32 %v938, %v1038
  %v1040 = vpop.f32.mrb[0].mxu0
  %v1041 = vpop.f32.mrb[0].mxu0
  %v1042 = vadd.f32 %v938, %v1041
  %v1043 = vpop.f32.mrb[0].mxu0
  %1044 = vmatprep.mubr.bf16.mxu0 0
  %1045 = vmatmul.mubr.bf16.gmra.mrb[0].mxu0 %v904
  %v1046 = vpop.f32.mrb[0].mxu0
  %v1047 = vadd.f32 %v938, %v1046
  %v1048 = vpop.f32.mrb[0].mxu0
  %v1049 = vpop.f32.mrb[0].mxu0
  %v1050 = vadd.f32 %v938, %v1049
  %v1051 = vpop.f32.mrb[0].mxu0
  %1052 = vmatprep.mubr.bf16.mxu0 0
  %1053 = vmatmul.mubr.bf16.gmra.mrb[0].mxu0 %v905
  %v1054 = vpop.f32.mrb[0].mxu0
  %v1055 = vadd.f32 %v938, %v1054
  %v1056 = vpop.f32.mrb[0].mxu0
  %v1057 = vpop.f32.mrb[0].mxu0
  %v1058 = vadd.f32 %v938, %v1057
  %v1059 = vpop.f32.mrb[0].mxu0
  %1060 = vmatprep.mubr.bf16.mxu0 0
  %1061 = vmatmul.mubr.bf16.gmra.mrb[0].mxu0 %v906
  %v1062 = vpop.f32.mrb[0].mxu0
  %v1063 = vadd.f32 %v938, %v1062
  %v1064 = vpop.f32.mrb[0].mxu0
  %v1065 = vpop.f32.mrb[0].mxu0
  %v1066 = vadd.f32 %v938, %v1065
  %v1067 = vpop.f32.mrb[0].mxu0
  %1068 = vmatprep.mubr.bf16.mxu0 0
  %1069 = vmatmul.mubr.bf16.gmra.mrb[0].mxu0 %v907
  %v1070 = vpop.f32.mrb[0].mxu0
  %v1071 = vadd.f32 %v938, %v1070
  %v1072 = vpop.f32.mrb[0].mxu0
  %v1073 = vpop.f32.mrb[0].mxu0
  %v1074 = vadd.f32 %v938, %v1073
  %v1075 = vpop.f32.mrb[0].mxu0
  %1076 = vmatprep.mubr.bf16.mxu0 0
  %1077 = vmatmul.mubr.bf16.gmra.mrb[0].mxu0 %v908
  %v1078 = vpop.f32.mrb[0].mxu0
  %v1079 = vadd.f32 %v938, %v1078
  %v1080 = vpop.f32.mrb[0].mxu0
  %v1081 = vpop.f32.mrb[0].mxu0
  %v1082 = vadd.f32 %v938, %v1081
  %v1083 = vpop.f32.mrb[0].mxu0
  %1084 = vmatprep.mubr.bf16.mxu0 0
  %1085 = vmatmul.mubr.bf16.gmra.mrb[0].mxu0 %v909
  %v1086 = vpop.f32.mrb[0].mxu0
  %v1087 = vadd.f32 %v938, %v1086
  %v1088 = vpop.f32.mrb[0].mxu0
  %v1089 = vpop.f32.mrb[0].mxu0
  %v1090 = vadd.f32 %v938, %v1089
  %v1091 = vpop.f32.mrb[0].mxu0
  %1092 = vmatprep.mubr.bf16.mxu0 0
  %1093 = vmatmul.mubr.bf16.gmra.mrb[0].mxu0 %v910
  %v1094 = vpop.f32.mrb[0].mxu0
  %v1095 = vadd.f32 %v938, %v1094
  %v1096 = vpop.f32.mrb[0].mxu0
  %v1097 = vpop.f32.mrb[0].mxu0
  %v1098 = vadd.f32 %v938, %v1097
  %v1099 = vpop.f32.mrb[0].mxu0
  %1100 = vmatprep.mubr.bf16.mxu0 0
  %1101 = vmatmul.mubr.bf16.gmra.mrb[0].mxu0 %v911
  %v1102 = vpop.f32.mrb[0].mxu0
  %v1103 = vadd.f32 %v938, %v1102
  %v1104 = vpop.f32.mrb[0].mxu0
  %v1105 = vpop.f32.mrb[0].mxu0
  %v1106 = vadd.f32 %v938, %v1105
  %v1107 = vpop.f32.mrb[0].mxu0
  %1108 = vmatprep.mubr.bf16.mxu0 0
  %1109 = vmatmul.mubr.bf16.gmra.mrb[0].mxu0 %v912
  %v1110 = vpop.f32.mrb[0].mxu0
  %v1111 = vadd.f32 %v938, %v1110
  %v1112 = vpop.f32.mrb[0].mxu0
  %v1113 = vpop.f32.mrb[0].mxu0
  %v1114 = vadd.f32 %v938, %v1113
  %v1115 = vpop.f32.mrb[0].mxu0
  %1116 = vmatprep.mubr.bf16.mxu0 0
  %1117 = vmatmul.mubr.bf16.gmra.mrb[0].mxu0 %v913
  %v1118 = vpop.f32.mrb[0].mxu0
  %v1119 = vadd.f32 %v938, %v1118
  %v1120 = vpop.f32.mrb[0].mxu0
  %v1121 = vpop.f32.mrb[0].mxu0
  %v1122 = vadd.f32 %v938, %v1121
  %v1123 = vpop.f32.mrb[0].mxu0
  %1124 = vmatprep.mubr.bf16.mxu0 0
  %1125 = vmatmul.mubr.bf16.gmra.mrb[0].mxu0 %v914
  %v1126 = vpop.f32.mrb[0].mxu0
  %v1127 = vadd.f32 %v938, %v1126
  %v1128 = vpop.f32.mrb[0].mxu0
  %v1129 = vpop.f32.mrb[0].mxu0
  %v1130 = vadd.f32 %v938, %v1129
  %v1131 = vpop.f32.mrb[0].mxu0
  %1132 = vmatprep.mubr.bf16.mxu0 0
  %1133 = vmatmul.mubr.bf16.gmra.mrb[0].mxu0 %v915
  %v1134 = vpop.f32.mrb[0].mxu0
  %v1135 = vadd.f32 %v938, %v1134
  %v1136 = vpop.f32.mrb[0].mxu0
  %v1137 = vpop.f32.mrb[0].mxu0
  %v1138 = vadd.f32 %v938, %v1137
  %v1139 = vpop.f32.mrb[0].mxu0
  %1140 = vmatprep.mubr.bf16.mxu0 0
  %1141 = vmatmul.mubr.bf16.gmra.mrb[0].mxu0 %v916
  %v1142 = vpop.f32.mrb[0].mxu0
  %v1143 = vadd.f32 %v938, %v1142
  %v1144 = vpop.f32.mrb[0].mxu0
  %v1145 = vpop.f32.mrb[0].mxu0
  %v1146 = vadd.f32 %v938, %v1145
  %v1147 = vpop.f32.mrb[0].mxu0
  %1148 = vdwg.mxu0
  %v1149 = vmax.f32 %v1023, 0.0
  %v1150 = vmax.f32 %v1026, 0.0
  %v1151 = vmax.f32 %v1031, 0.0
  %v1152 = vmax.f32 %v1034, 0.0
  %v1153 = vmax.f32 %v1039, 0.0
  %v1154 = vmax.f32 %v1042, 0.0
  %v1155 = vmax.f32 %v1047, 0.0
  %v1156 = vmax.f32 %v1050, 0.0
  %v1157 = vmax.f32 %v1055, 0.0
  %v1158 = vmax.f32 %v1058, 0.0
  %v1159 = vmax.f32 %v1063, 0.0
  %v1160 = vmax.f32 %v1066, 0.0
  %v1161 = vmax.f32 %v1071, 0.0
  %v1162 = vmax.f32 %v1074, 0.0
  %v1163 = vmax.f32 %v1079, 0.0
  %v1164 = vmax.f32 %v1082, 0.0
  %v1165 = vmax.f32 %v1087, 0.0
  %v1166 = vmax.f32 %v1090, 0.0
  %v1167 = vmax.f32 %v1095, 0.0
  %v1168 = vmax.f32 %v1098, 0.0
  %v1169 = vmax.f32 %v1103, 0.0
  %v1170 = vmax.f32 %v1106, 0.0
  %v1171 = vmax.f32 %v1111, 0.0
  %v1172 = vmax.f32 %v1114, 0.0
  %v1173 = vmax.f32 %v1119, 0.0
  %v1174 = vmax.f32 %v1122, 0.0
  %v1175 = vmax.f32 %v1127, 0.0
  %v1176 = vmax.f32 %v1130, 0.0
  %v1177 = vmax.f32 %v1135, 0.0
  %v1178 = vmax.f32 %v1138, 0.0
  %v1179 = vmax.f32 %v1143, 0.0
  %v1180 = vmax.f32 %v1146, 0.0
  %v1181 = vld [vmem:[%s5] sm:$0x1]
  %v1183 = vlaneseq
  %v1184 = vshrl.u32 %v1183, 7
  %v1185 = vsub.s32 0, %v1184
  %v1186 = vrot.slane %v1181, %v1185
  %v1188 = vmul.f32 %v1149, %v1186
  %v1189 = vmul.f32 %v1150, %v1186
  %v1190 = vmul.f32 %v1151, %v1186
  %v1191 = vmul.f32 %v1152, %v1186
  %v1192 = vmul.f32 %v1153, %v1186
  %v1193 = vmul.f32 %v1154, %v1186
  %v1194 = vmul.f32 %v1155, %v1186
  %v1195 = vmul.f32 %v1156, %v1186
  %v1196 = vmul.f32 %v1157, %v1186
  %v1197 = vmul.f32 %v1158, %v1186
  %v1198 = vmul.f32 %v1159, %v1186
  %v1199 = vmul.f32 %v1160, %v1186
  %v1200 = vmul.f32 %v1161, %v1186
  %v1201 = vmul.f32 %v1162, %v1186
  %v1202 = vmul.f32 %v1163, %v1186
  %v1203 = vmul.f32 %v1164, %v1186
  %v1204 = vmul.f32 %v1165, %v1186
  %v1205 = vmul.f32 %v1166, %v1186
  %v1206 = vmul.f32 %v1167, %v1186
  %v1207 = vmul.f32 %v1168, %v1186
  %v1208 = vmul.f32 %v1169, %v1186
  %v1209 = vmul.f32 %v1170, %v1186
  %v1210 = vmul.f32 %v1171, %v1186
  %v1211 = vmul.f32 %v1172, %v1186
  %v1212 = vmul.f32 %v1173, %v1186
  %v1213 = vmul.f32 %v1174, %v1186
  %v1214 = vmul.f32 %v1175, %v1186
  %v1215 = vmul.f32 %v1176, %v1186
  %v1216 = vmul.f32 %v1177, %v1186
  %v1217 = vmul.f32 %v1178, %v1186
  %v1218 = vmul.f32 %v1179, %v1186
  %v1219 = vmul.f32 %v1180, %v1186
  %vm1220 = vcmask 523264
  %v1221 = vsel %vm1220, %v1188, 0.0
  %1222 = vadd.xlane.f32.xlu0 %v1221
  %v1223 = vpop.xlane.xlu0 %1222
  %v1224 = vsel %vm1220, %v1189, 0.0
  %1225 = vadd.xlane.f32.xlu0 %v1224
  %v1226 = vpop.xlane.xlu0 %1225
  %v1227 = vsel %vm1220, %v1190, 0.0
  %1228 = vadd.xlane.f32.xlu0 %v1227
  %v1229 = vpop.xlane.xlu0 %1228
  %v1230 = vsel %vm1220, %v1191, 0.0
  %1231 = vadd.xlane.f32.xlu0 %v1230
  %v1232 = vpop.xlane.xlu0 %1231
  %v1233 = vsel %vm1220, %v1192, 0.0
  %1234 = vadd.xlane.f32.xlu0 %v1233
  %v1235 = vpop.xlane.xlu0 %1234
  %v1236 = vsel %vm1220, %v1193, 0.0
  %1237 = vadd.xlane.f32.xlu0 %v1236
  %v1238 = vpop.xlane.xlu0 %1237
  %v1239 = vsel %vm1220, %v1194, 0.0
  %1240 = vadd.xlane.f32.xlu0 %v1239
  %v1241 = vpop.xlane.xlu0 %1240
  %v1242 = vsel %vm1220, %v1195, 0.0
  %1243 = vadd.xlane.f32.xlu0 %v1242
  %v1244 = vpop.xlane.xlu0 %1243
  %v1245 = vsel %vm1220, %v1196, 0.0
  %1246 = vadd.xlane.f32.xlu0 %v1245
  %v1247 = vpop.xlane.xlu0 %1246
  %v1248 = vsel %vm1220, %v1197, 0.0
  %1249 = vadd.xlane.f32.xlu0 %v1248
  %v1250 = vpop.xlane.xlu0 %1249
  %v1251 = vsel %vm1220, %v1198, 0.0
  %1252 = vadd.xlane.f32.xlu0 %v1251
  %v1253 = vpop.xlane.xlu0 %1252
  %v1254 = vsel %vm1220, %v1199, 0.0
  %1255 = vadd.xlane.f32.xlu0 %v1254
  %v1256 = vpop.xlane.xlu0 %1255
  %v1257 = vsel %vm1220, %v1200, 0.0
  %1258 = vadd.xlane.f32.xlu0 %v1257
  %v1259 = vpop.xlane.xlu0 %1258
  %v1260 = vsel %vm1220, %v1201, 0.0
  %1261 = vadd.xlane.f32.xlu0 %v1260
  %v1262 = vpop.xlane.xlu0 %1261
  %v1263 = vsel %vm1220, %v1202, 0.0
  %1264 = vadd.xlane.f32.xlu0 %v1263
  %v1265 = vpop.xlane.xlu0 %1264
  %v1266 = vsel %vm1220, %v1203, 0.0
  %1267 = vadd.xlane.f32.xlu0 %v1266
  %v1268 = vpop.xlane.xlu0 %1267
  %v1269 = vsel %vm1220, %v1204, 0.0
  %1270 = vadd.xlane.f32.xlu0 %v1269
  %v1271 = vpop.xlane.xlu0 %1270
  %v1272 = vsel %vm1220, %v1205, 0.0
  %1273 = vadd.xlane.f32.xlu0 %v1272
  %v1274 = vpop.xlane.xlu0 %1273
  %v1275 = vsel %vm1220, %v1206, 0.0
  %1276 = vadd.xlane.f32.xlu0 %v1275
  %v1277 = vpop.xlane.xlu0 %1276
  %v1278 = vsel %vm1220, %v1207, 0.0
  %1279 = vadd.xlane.f32.xlu0 %v1278
  %v1280 = vpop.xlane.xlu0 %1279
  %v1281 = vsel %vm1220, %v1208, 0.0
  %1282 = vadd.xlane.f32.xlu0 %v1281
  %v1283 = vpop.xlane.xlu0 %1282
  %v1284 = vsel %vm1220, %v1209, 0.0
  %1285 = vadd.xlane.f32.xlu0 %v1284
  %v1286 = vpop.xlane.xlu0 %1285
  %v1287 = vsel %vm1220, %v1210, 0.0
  %1288 = vadd.xlane.f32.xlu0 %v1287
  %v1289 = vpop.xlane.xlu0 %1288
  %v1290 = vsel %vm1220, %v1211, 0.0
  %1291 = vadd.xlane.f32.xlu0 %v1290
  %v1292 = vpop.xlane.xlu0 %1291
  %v1293 = vsel %vm1220, %v1212, 0.0
  %1294 = vadd.xlane.f32.xlu0 %v1293
  %v1295 = vpop.xlane.xlu0 %1294
  %v1296 = vsel %vm1220, %v1213, 0.0
  %1297 = vadd.xlane.f32.xlu0 %v1296
  %v1298 = vpop.xlane.xlu0 %1297
  %v1299 = vsel %vm1220, %v1214, 0.0
  %1300 = vadd.xlane.f32.xlu0 %v1299
  %v1301 = vpop.xlane.xlu0 %1300
  %v1302 = vsel %vm1220, %v1215, 0.0
  %1303 = vadd.xlane.f32.xlu0 %v1302
  %v1304 = vpop.xlane.xlu0 %1303
  %v1305 = vsel %vm1220, %v1216, 0.0
  %1306 = vadd.xlane.f32.xlu0 %v1305
  %v1307 = vpop.xlane.xlu0 %1306
  %v1308 = vsel %vm1220, %v1217, 0.0
  %1309 = vadd.xlane.f32.xlu0 %v1308
  %v1310 = vpop.xlane.xlu0 %1309
  %v1311 = vsel %vm1220, %v1218, 0.0
  %1312 = vadd.xlane.f32.xlu0 %v1311
  %v1313 = vpop.xlane.xlu0 %1312
  %v1314 = vsel %vm1220, %v1219, 0.0
  %1315 = vadd.xlane.f32.xlu0 %v1314
  %v1316 = vpop.xlane.xlu0 %1315
  %s1317 = sld [smem:[#allocation2]]
  %v1318 = vstv %s1317
  %v1319 = vadd.f32 %v1223, %v1318
  %v1320 = vadd.f32 %v1226, %v1318
  %v1321 = vadd.f32 %v1229, %v1318
  %v1322 = vadd.f32 %v1232, %v1318
  %v1323 = vadd.f32 %v1235, %v1318
  %v1324 = vadd.f32 %v1238, %v1318
  %v1325 = vadd.f32 %v1241, %v1318
  %v1326 = vadd.f32 %v1244, %v1318
  %v1327 = vadd.f32 %v1247, %v1318
  %v1328 = vadd.f32 %v1250, %v1318
  %v1329 = vadd.f32 %v1253, %v1318
  %v1330 = vadd.f32 %v1256, %v1318
  %v1331 = vadd.f32 %v1259, %v1318
  %v1332 = vadd.f32 %v1262, %v1318
  %v1333 = vadd.f32 %v1265, %v1318
  %v1334 = vadd.f32 %v1268, %v1318
  %v1335 = vadd.f32 %v1271, %v1318
  %v1336 = vadd.f32 %v1274, %v1318
  %v1337 = vadd.f32 %v1277, %v1318
  %v1338 = vadd.f32 %v1280, %v1318
  %v1339 = vadd.f32 %v1283, %v1318
  %v1340 = vadd.f32 %v1286, %v1318
  %v1341 = vadd.f32 %v1289, %v1318
  %v1342 = vadd.f32 %v1292, %v1318
  %v1343 = vadd.f32 %v1295, %v1318
  %v1344 = vadd.f32 %v1298, %v1318
  %v1345 = vadd.f32 %v1301, %v1318
  %v1346 = vadd.f32 %v1304, %v1318
  %v1347 = vadd.f32 %v1307, %v1318
  %v1348 = vadd.f32 %v1310, %v1318
  %v1349 = vadd.f32 %v1313, %v1318
  %v1350 = vadd.f32 %v1316, %v1318
  %vm1351 = vcmask 7168
  %1352 = vst.msk [vmem:[%s7] sm:$0xff] %vm1351, %v1319
  %1353 = vst.msk [vmem:[%s7 + $0x8] sm:$0xff] %vm1351, %v1320
  %1354 = vst.msk [vmem:[%s7 + $0x10] sm:$0xff] %vm1351, %v1321
  %1355 = vst.msk [vmem:[%s7 + $0x18] sm:$0xff] %vm1351, %v1322
  %1356 = vst.msk [vmem:[%s7 + $0x20] sm:$0xff] %vm1351, %v1323
  %1357 = vst.msk [vmem:[%s7 + $0x28] sm:$0xff] %vm1351, %v1324
  %1358 = vst.msk [vmem:[%s7 + $0x30] sm:$0xff] %vm1351, %v1325
  %1359 = vst.msk [vmem:[%s7 + $0x38] sm:$0xff] %vm1351, %v1326
  %1360 = vst.msk [vmem:[%s7 + $0x40] sm:$0xff] %vm1351, %v1327
  %1361 = vst.msk [vmem:[%s7 + $0x48] sm:$0xff] %vm1351, %v1328
  %1362 = vst.msk [vmem:[%s7 + $0x50] sm:$0xff] %vm1351, %v1329
  %1363 = vst.msk [vmem:[%s7 + $0x58] sm:$0xff] %vm1351, %v1330
  %1364 = vst.msk [vmem:[%s7 + $0x60] sm:$0xff] %vm1351, %v1331
  %1365 = vst.msk [vmem:[%s7 + $0x68] sm:$0xff] %vm1351, %v1332
  %1366 = vst.msk [vmem:[%s7 + $0x70] sm:$0xff] %vm1351, %v1333
  %1367 = vst.msk [vmem:[%s7 + $0x78] sm:$0xff] %vm1351, %v1334
  %1368 = vst.msk [vmem:[%s7 + $0x80] sm:$0xff] %vm1351, %v1335
  %1369 = vst.msk [vmem:[%s7 + $0x88] sm:$0xff] %vm1351, %v1336
  %1370 = vst.msk [vmem:[%s7 + $0x90] sm:$0xff] %vm1351, %v1337
  %1371 = vst.msk [vmem:[%s7 + $0x98] sm:$0xff] %vm1351, %v1338
  %1372 = vst.msk [vmem:[%s7 + $0xa0] sm:$0xff] %vm1351, %v1339
  %1373 = vst.msk [vmem:[%s7 + $0xa8] sm:$0xff] %vm1351, %v1340
  %1374 = vst.msk [vmem:[%s7 + $0xb0] sm:$0xff] %vm1351, %v1341
  %1375 = vst.msk [vmem:[%s7 + $0xb8] sm:$0xff] %vm1351, %v1342
  %1376 = vst.msk [vmem:[%s7 + $0xc0] sm:$0xff] %vm1351, %v1343
  %1377 = vst.msk [vmem:[%s7 + $0xc8] sm:$0xff] %vm1351, %v1344
  %1378 = vst.msk [vmem:[%s7 + $0xd0] sm:$0xff] %vm1351, %v1345
  %1379 = vst.msk [vmem:[%s7 + $0xd8] sm:$0xff] %vm1351, %v1346
  %1380 = vst.msk [vmem:[%s7 + $0xe0] sm:$0xff] %vm1351, %v1347
  %1381 = vst.msk [vmem:[%s7 + $0xe8] sm:$0xff] %vm1351, %v1348
  %1382 = vst.msk [vmem:[%s7 + $0xf0] sm:$0xff] %vm1351, %v1349
  %1383 = vst.msk [vmem:[%s7 + $0xf8] sm:$0xff] %vm1351, %v1350
  // Predicated region
  $region30: #{story_sum_forward.1} parent=0 // pred_check
    _
  $region31: #{story_sum_forward.1} parent=0 // pred_check_branch
    %1385 = sbr.rel (0) target = $region33
  $region32: #{story_sum_forward.1} parent=0 // pred_region
    _
  $region33: #{story_sum_forward.1} parent=0 // pred_fallthru
    _
  // Predicated region
  $region34: #{story_sum_forward.1} parent=0 // pred_check
    _
  $region35: #{story_sum_forward.1} parent=0 // pred_check_branch
    %1387 = sbr.rel (0) target = $region37
  $region36: #{story_sum_forward.1} parent=0 // pred_region
    _
  $region37: #{story_sum_forward.1} parent=0 // pred_fallthru
    _

</llo_original>
